<compile_context>
chip_gen: v7x
topology: tpu7x:2x2x1
jax: 0.10.0
libtpu: 0.0.40
codegen_flags: <defaults>
</compile_context>

<pallas_src>
import math

import jax
import jax.numpy as jnp
from jax.experimental import pallas as pl
from jax.experimental.pallas import tpu as pltpu


_TARGET_X_BLOCK_BYTES = 2 * 1024 * 1024    # ~2 MiB of x per grid step (1-4 MiB sweet spot)
_VMEM_WORKING_SET_CAP = 20 * 1024 * 1024   # double-buffered x + gate + out budget (v7x-safe)
_VMEM_LIMIT_BYTES = 32 * 1024 * 1024       # = default scoped VMEM on v6e/v7x, raises v5e's 16 MiB


def _cond_dropout_tile_kernel(x_ref, gate_ref, o_ref):
    """x: (bm, D); gate: (bm, K) int8 0/1. Gate is tiled to D in-kernel (narrow HBM read)."""
    x = x_ref[...]
    gate = gate_ref[...].astype(x.dtype)                 # cast on the narrow K-wide tile
    scale = x.shape[-1] // gate.shape[-1]
    # torch.Tensor.repeat along the last dim == concat copies == jnp.tile
    o_ref[...] = x * jnp.tile(gate, (1, scale))


def _cond_dropout_mul_kernel(x_ref, gate_ref, o_ref):
    """Lane-packed path: x and gate have identical (lane-dense) shapes; gate is int8 0/1."""
    o_ref[...] = x_ref[...] * gate_ref[...].astype(x_ref.dtype)


def _round_up(a, b):
    return ((a + b - 1) // b) * b


def _pick_block_rows(n_rows, x_row_bytes, gate_row_bytes):
    """Largest row block giving ~2 MiB of x per step while the double-buffered
    working set (x + gate + out, 2 buffers each) stays well under the VMEM budget."""
    sub = 32  # multiple of the sublane quantum for f32(8)/bf16(16)/int8(32) alike
    cand = max(1, _TARGET_X_BLOCK_BYTES // x_row_bytes)
    cand = min(cand, max(1, _VMEM_WORKING_SET_CAP // (2 * (2 * x_row_bytes + gate_row_bytes))))
    cand = max(sub, (cand // sub) * sub)
    cand = min(cand, _round_up(n_rows, sub))
    # Prefer a block that evenly divides n_rows (no pad copy), but never shrink below
    # half the target -- otherwise the caller pads the rows up to a block multiple.
    b = cand
    while b >= sub and 2 * b >= cand:
        if n_rows % b == 0:
            return b
        b -= sub
    return cand


def conditioned_dropout(x, sfa):
    """out[..., d] = 0 if sfa[..., d % K] == 0 else x[..., d]  (D = x.shape[-1], K = sfa.shape[-1])."""
    assert x.shape[:-1] == sfa.shape[:-1], "leading dims must match"
    D = x.shape[-1]
    K = sfa.shape[-1]
    assert D % K == 0, "x last dim must be a multiple of sfa last dim"
    scale = D // K

    lead = x.shape[:-1]
    rows = math.prod(lead) if lead else 1
    x2 = x.reshape(rows, D)
    # 0/1 gate as int8: 4x less mask HBM traffic than shipping f32 sfa to the kernel.
    gate_narrow = (sfa.reshape(rows, K) != 0).astype(jnp.int8)

    fold = 1
    if D % 128 != 0:
        g = 128 // math.gcd(D, 128)          # smallest fold that makes the lane dim 128-aligned
        if rows % g == 0:
            fold = g

    if fold > 1:
        # Lane-packed path: fold `fold` rows into the lane dim -> unmasked, lane-dense stores.
        width = fold * D
        x_w = x2.reshape(rows // fold, width)
        # Expand the gate to D width (still int8) in the wrapper, folded identically to x,
        # so the kernel needs no in-kernel reshape -- just one multiply.
        gate_w = jnp.tile(gate_narrow, (1, scale)).reshape(rows // fold, width)
        gate_width = width
        kernel = _cond_dropout_mul_kernel
    else:
        # D already lane-aligned (or un-foldable rows): keep the gate narrow (K wide) and
        # tile it to D inside the kernel.
        width = D
        x_w = x2
        gate_w = gate_narrow
        gate_width = K
        kernel = _cond_dropout_tile_kernel

    wrows = rows // fold
    itemsize = jnp.dtype(x.dtype).itemsize
    # NOTE: rows wider than ~1 MiB each would additionally need lane-dim tiling; not
    # needed for this module's realistic hidden sizes.
    block_rows = _pick_block_rows(wrows, width * itemsize, gate_width)  # gate is 1 byte/elem

    rows_p = _round_up(wrows, block_rows)
    if rows_p != wrows:                      # pad the tail instead of a full-array fallback block
        x_w = jnp.pad(x_w, ((0, rows_p - wrows), (0, 0)))
        gate_w = jnp.pad(gate_w, ((0, rows_p - wrows), (0, 0)))

    out = pl.pallas_call(
        kernel,
        out_shape=jax.ShapeDtypeStruct((rows_p, width), x.dtype),
        grid_spec=pltpu.PrefetchScalarGridSpec(
            num_scalar_prefetch=0,
            grid=(rows_p // block_rows,),
            in_specs=[
                pl.BlockSpec((block_rows, width), lambda i: (i, 0)),
                pl.BlockSpec((block_rows, gate_width), lambda i: (i, 0)),
            ],
            out_specs=pl.BlockSpec((block_rows, width), lambda i: (i, 0)),
        ),
        compiler_params=pltpu.CompilerParams(
            dimension_semantics=("parallel",),   # v7x: shards grid steps across both TensorCores
            vmem_limit_bytes=_VMEM_LIMIT_BYTES,
        ),
    )(x_w, gate_w)

    return out[:wrows].reshape(x.shape)


def _reference(x, sfa):
    scale = x.shape[-1] // sfa.shape[-1]
    reps = (1,) * (x.ndim - 1) + (scale,)
    mask = jnp.tile(sfa, reps)
    return jnp.where(mask == 0, jnp.zeros_like(x), x)


if __name__ == "__main__":
    key = jax.random.PRNGKey(0)
    kx, ks, kx2, ks2 = jax.random.split(key, 4)

    # Case 1: D < 128 -> lane-packed path (rows folded into the lane dim, pure multiply).
    B, S, D, K = 2, 8, 32, 8          # D // K = 4 repeat factor
    x = jax.random.normal(kx, (B, S, D), dtype=jnp.float32)
    sfa = (jax.random.uniform(ks, (B, S, K)) > 0.5).astype(jnp.float32)
    out = conditioned_dropout(x, sfa)
    jax.block_until_ready(out)
    assert out.shape == x.shape and out.dtype == x.dtype
    assert jnp.allclose(out, _reference(x, sfa)), "mismatch vs reference (lane-packed path)"

    # Case 2: D % 128 == 0 -> narrow int8 gate, tiled in-kernel.
    D2 = 128
    x2 = jax.random.normal(kx2, (B, S, D2), dtype=jnp.float32)
    sfa2 = (jax.random.uniform(ks2, (B, S, K)) > 0.5).astype(jnp.float32)
    out2 = conditioned_dropout(x2, sfa2)
    jax.block_until_ready(out2)
    assert out2.shape == x2.shape and out2.dtype == x2.dtype
    assert jnp.allclose(out2, _reference(x2, sfa2)), "mismatch vs reference (narrow-gate path)"

    print("KERNEL_OK")
</pallas_src>

<mosaic_0001>
module attributes {stable_mosaic.version = 11 : i64} {
  func.func @_cond_dropout_mul_kernel(%arg0: i32, %arg1: memref<32x128xf32, #tpu.memory_space<vmem>>, %arg2: memref<32x128xi8, #tpu.memory_space<vmem>>, %arg3: memref<32x128xf32, #tpu.memory_space<vmem>>) attributes {dimension_semantics = [#tpu.dimension_semantics<parallel>], iteration_bounds = array<i64: 1>, scalar_prefetch = 0 : i64, scratch_operands = 0 : i64, tpu.core_type = #tpu.core_type<tc>, window_params = [{transform_indices = @transform_0, window_bounds = array<i64: 32, 128>}, {transform_indices = @transform_1, window_bounds = array<i64: 32, 128>}, {transform_indices = @transform_2, window_bounds = array<i64: 32, 128>}]} {
    %c0 = arith.constant 0 : index
    %c0_0 = arith.constant 0 : index
    %0 = vector.load %arg1[%c0, %c0_0] : memref<32x128xf32, #tpu.memory_space<vmem>>, vector<32x128xf32>
    %c0_1 = arith.constant 0 : index
    %c0_2 = arith.constant 0 : index
    %1 = vector.load %arg2[%c0_1, %c0_2] : memref<32x128xi8, #tpu.memory_space<vmem>>, vector<32x128xi8>
    %2 = arith.sitofp %1 : vector<32x128xi8> to vector<32x128xf32>
    %3 = arith.mulf %0, %2 : vector<32x128xf32>
    %c0_3 = arith.constant 0 : index
    %c0_4 = arith.constant 0 : index
    %4 = vector.load %arg3[%c0_3, %c0_4] : memref<32x128xf32, #tpu.memory_space<vmem>>, vector<32x128xf32>
    tpu.vector_store %arg3[%c0_3, %c0_4], %3 {strides = array<i32>} : memref<32x128xf32, #tpu.memory_space<vmem>>, vector<32x128xf32>,
    return
  }
  func.func @transform_0(%arg0: i32) -> (i32, i32) {
    %c0_i32 = arith.constant 0 : i32
    %c0_i32_0 = arith.constant 0 : i32
    return %arg0, %c0_i32 : i32, i32
  }
  func.func @transform_1(%arg0: i32) -> (i32, i32) {
    %c0_i32 = arith.constant 0 : i32
    %c0_i32_0 = arith.constant 0 : i32
    return %arg0, %c0_i32 : i32, i32
  }
  func.func @transform_2(%arg0: i32) -> (i32, i32) {
    %c0_i32 = arith.constant 0 : i32
    %c0_i32_0 = arith.constant 0 : i32
    return %arg0, %c0_i32 : i32, i32
  }
}

</mosaic_0001>

<llo_original>
// kernel: tpu_custom_call.1
$region0: #{tpu_custom_call.1}
  #allocation0 [shape = 'u32[]', space=smem, size = 0x4, offset = 0x4, fixed_abs, tag = 'smem constant byte address 0x4 - core index']
  #allocation1 [shape = 'u32[144,128]{1,0:T(1,128)}', space=vmem, size = 0x12000, scoped, tag = 'internal scratch']
  %s0 = inlined_call_operand.hbm [shape: f32[32,128], index: 0, kind: input, shape index: {}]
  %s1 = inlined_call_operand.hbm [shape: s8[32,128], index: 1, kind: input, shape index: {}]
  %s2 = inlined_call_operand.hbm [shape: f32[32,128], index: 2, kind: output, shape index: {}]
  %s3 = sld [smem:[#allocation0]]
  $region26: #{tpu_custom_call.1} parent=0
    _
  %s5 = ssub.s32 1, %s3
  %s6 = scalar_select 0, %s5, %s3
  $region1: #{tpu_custom_call.1} parent=0
    #allocation2 [shape = 'u8[16384]{0}', space=vmem, size = 0x4000, scoped, tag = 'input window, operand 0, single buffered']
    #allocation3 [shape = 's32[1]{0}', space=sflag, size = 0x4, scoped, tag = 'scoped memory for tpu_custom_call.1']
    #allocation4 [shape = 's32[1]{0}', space=sflag, size = 0x4, scoped, tag = 'scoped memory for tpu_custom_call.1']
    #allocation5 [shape = 'u8[4096]{0}', space=vmem, size = 0x1000, scoped, tag = 'input window, operand 1, single buffered']
    #allocation6 [shape = 's32[1]{0}', space=sflag, size = 0x4, scoped, tag = 'scoped memory for tpu_custom_call.1']
    #allocation7 [shape = 'u8[16384]{0}', space=vmem, size = 0x4000, scoped, tag = 'output window, operand 0, single buffered']
    %7 = vsyncpa [#allocation3], 0
    %8 = vsyncpa [#allocation6], 0
    %9 = vsyncpa [#allocation4], 0
    // Predicated region
    $region2: #{tpu_custom_call.1} parent=1 // pred_check
      _
    $region3: #{tpu_custom_call.1} parent=1 // pred_check_branch
      %11 = sbr.rel (0) target = $region5
    $region4: #{tpu_custom_call.1} parent=1 // pred_region
      %s13 = ssub.s32 512, 512
      %14 = vsyncadd [#allocation3], %s13
      %s15 = sshll.u32 [#allocation2], 4
      %s16 = int_to_ptr.vmem [resolvable:$true] %s15
      %21 = dma.hbm_to_vmem [thread:$0]  %s0, 512, %s16, [#allocation3], 128, 128, 8
    $region5: #{tpu_custom_call.1} parent=1 // pred_fallthru
      _
    // Predicated region
    $region6: #{tpu_custom_call.1} parent=1 // pred_check
      _
    $region7: #{tpu_custom_call.1} parent=1 // pred_check_branch
      %23 = sbr.rel (0) target = $region9
    $region8: #{tpu_custom_call.1} parent=1 // pred_region
      %s25 = ssub.s32 128, 128
      %26 = vsyncadd [#allocation6], %s25
      %s28 = sshll.u32 [#allocation5], 4
      %s29 = int_to_ptr.vmem [resolvable:$true] %s28
      %31 = dma.hbm_to_vmem [thread:$0]  %s1, 128, %s29, [#allocation6]
    $region9: #{tpu_custom_call.1} parent=1 // pred_fallthru
      _
    // Predicated region
    $region10: #{tpu_custom_call.1} parent=1 // pred_check
      _
    $region11: #{tpu_custom_call.1} parent=1 // pred_check_branch
      %33 = sbr.rel (0) target = $region13
    $region12: #{tpu_custom_call.1} parent=1 // pred_region
      %34 = dma.done [#allocation3], 512
    $region13: #{tpu_custom_call.1} parent=1 // pred_fallthru
      _
    // Predicated region
    $region14: #{tpu_custom_call.1} parent=1 // pred_check
      _
    $region15: #{tpu_custom_call.1} parent=1 // pred_check_branch
      %36 = sbr.rel (0) target = $region17
    $region16: #{tpu_custom_call.1} parent=1 // pred_region
      %37 = dma.done [#allocation6], 128
    $region17: #{tpu_custom_call.1} parent=1 // pred_fallthru
      _
    %v38 = vld [vmem:[#allocation2] sm:$0xff]
    %v39 = vld [vmem:[#allocation2 + $0x8] sm:$0xff]
    %v40 = vld [vmem:[#allocation2 + $0x10] sm:$0xff]
    %v41 = vld [vmem:[#allocation2 + $0x18] sm:$0xff]
    %v42 = vld [vmem:[#allocation5] sm:$0xff]
    %v43 = vunpack.c.0.s8 %v42
    %v44 = vunpack.c.1.s8 %v42
    %v45 = vunpack.c.2.s8 %v42
    %v46 = vunpack.c.3.s8 %v42
    %v47 = vcvt.s32.f32 %v43
    %v48 = vcvt.s32.f32 %v44
    %v49 = vcvt.s32.f32 %v45
    %v50 = vcvt.s32.f32 %v46
    %v51 = vmul.f32 %v38, %v47
    %v52 = vmul.f32 %v39, %v48
    %v53 = vmul.f32 %v40, %v49
    %v54 = vmul.f32 %v41, %v50
    %55 = vst [vmem:[#allocation7] sm:$0xff] %v51
    %56 = vst [vmem:[#allocation7 + $0x8] sm:$0xff] %v52
    %57 = vst [vmem:[#allocation7 + $0x10] sm:$0xff] %v53
    %58 = vst [vmem:[#allocation7 + $0x18] sm:$0xff] %v54
    // Predicated region
    $region18: #{tpu_custom_call.1} parent=1 // pred_check
      _
    $region19: #{tpu_custom_call.1} parent=1 // pred_check_branch
      %60 = sbr.rel (0) target = $region21
    $region20: #{tpu_custom_call.1} parent=1 // pred_region
      %s62 = ssub.s32 512, 512
      %63 = vsyncadd [#allocation4], %s62
      %s64 = sshll.u32 [#allocation7], 4
      %s65 = int_to_ptr.vmem [resolvable:$true] %s64
      %70 = dma.vmem_to_hbm [thread:$0]  %s65, 512, %s2, [#allocation4], 128, 128, 8
    $region21: #{tpu_custom_call.1} parent=1 // pred_fallthru
      _
    // Predicated region
    $region22: #{tpu_custom_call.1} parent=1 // pred_check
      _
    $region23: #{tpu_custom_call.1} parent=1 // pred_check_branch
      %72 = sbr.rel (0) target = $region25
    $region24: #{tpu_custom_call.1} parent=1 // pred_region
      %73 = dma.done [#allocation4], 512
    $region25: #{tpu_custom_call.1} parent=1 // pred_fallthru
      _
    %74 = vsyncpa [#allocation3], 1
    %75 = vsyncpa [#allocation6], 1
    %76 = vsyncpa [#allocation4], 1

</llo_original>
